<compile_context>
chip_gen: v7x
topology: tpu7x:2x2x1
jax: 0.10.0
libtpu: 0.0.40
codegen_flags: <defaults>
</compile_context>

<pallas_src>
import jax
import jax.numpy as jnp
from jax.experimental import pallas as pl
from jax.experimental.pallas import tpu as pltpu


def _round_up(x, m):
    return ((x + m - 1) // m) * m


# Conservative per-call VMEM budget (double-buffered x/out tiles + resident
# weight tile + accumulator).  Fits v5e's 16 MiB scoped default and stays well
# under v7x's 64 MiB physical VMEM.
_VMEM_BUDGET = 12 * 1024 * 1024
_MAX_BLOCK_K = 512          # K tile when input_dim is large
_K_TILE_THRESHOLD = 1024    # keep K untiled at or below this


def _linear_kernel(x_ref, w_ref, b_ref, o_ref, acc_ref):
    """One (i, j, k) grid step of out = x @ W_t + b.

    x_ref:   (block_m, block_k)
    w_ref:   (block_k, block_n)   -- weight pre-transposed to [K, N]
    b_ref:   (1, block_n)
    o_ref:   (block_m, block_n)
    acc_ref: (block_m, block_n) f32 VMEM scratch, resident across the k axis.
    """
    k = pl.program_id(2)

    @pl.when(k == 0)
    def _():
        acc_ref[...] = jnp.zeros_like(acc_ref)

    # Canonical NN contraction -> MXU, no RHS relayout/transpose per step.
    acc_ref[...] += jnp.dot(
        x_ref[...], w_ref[...], preferred_element_type=jnp.float32
    )

    @pl.when(k == pl.num_programs(2) - 1)
    def _():
        o_ref[...] = (acc_ref[...] + b_ref[...]).astype(o_ref.dtype)


def _call_linear(x, w_t, b2, *, block_m, block_n, block_k):
    """pallas_call for out[B, N_pad] = x[B, K_pad] @ w_t[K_pad, N_pad] + b2."""
    B, K_pad = x.shape
    N_pad = w_t.shape[1]
    grid = (pl.cdiv(B, block_m), N_pad // block_n, K_pad // block_k)
    return pl.pallas_call(
        _linear_kernel,
        out_shape=jax.ShapeDtypeStruct((B, N_pad), x.dtype),
        grid_spec=pltpu.PrefetchScalarGridSpec(
            num_scalar_prefetch=0,
            grid=grid,
            in_specs=[
                pl.BlockSpec((block_m, block_k), lambda i, j, k: (i, k)),
                pl.BlockSpec((block_k, block_n), lambda i, j, k: (k, j)),
                pl.BlockSpec((1, block_n), lambda i, j, k: (0, j)),
            ],
            out_specs=pl.BlockSpec((block_m, block_n), lambda i, j, k: (i, j)),
            scratch_shapes=[pltpu.VMEM((block_m, block_n), jnp.float32)],
        ),
        compiler_params=pltpu.CompilerParams(
            dimension_semantics=("parallel", "parallel", "arbitrary"),
        ),
    )(x, w_t, b2)


@jax.jit
def single_layer_regression(x, weight, bias):
    """Forward of SingleLayerRegression: y = x @ W.T + b.

    x:      [B, input_dim]           float32
    weight: [output_dim, input_dim]  (PyTorch nn.Linear convention)
    bias:   [output_dim]
    returns [B, output_dim]          float32
    """
    B, K = x.shape
    N = weight.shape[0]

    # One-time transpose to [K, N]; amortized over all batch tiles.  (In a real
    # model this would be done once at parameter-init time.)
    w_t = weight.T

    # ---- tiny / single-block fast path (covers the shipped config) --------
    # Whole problem is one block: no padding, no slicing, accept the masked
    # narrow-lane store -- the pad/slice plumbing would cost more than the op.
    if B <= 128 and N <= 512 and K <= _K_TILE_THRESHOLD:
        return _call_linear(
            x, w_t, bias.reshape(1, N), block_m=B, block_n=N, block_k=K
        )

    # ---- general path ------------------------------------------------------
    # K tiling: untiled for moderate K, else 512-wide tiles (zero-padded, so
    # padded columns contribute exactly 0 to the accumulator).
    if K <= _K_TILE_THRESHOLD:
        block_k, K_pad = K, K
    else:
        block_k = _MAX_BLOCK_K
        K_pad = _round_up(K, block_k)

    # N: pad to a lane-dense multiple of 128; tile with the largest of
    # {512, 256, 128} that divides N_pad (avoids over-padding, e.g. N=640).
    N_pad = _round_up(N, 128)
    block_n = next(bn for bn in (512, 256, 128) if N_pad % bn == 0)

    # M: largest tile that keeps 2x x-buffers + 2x out-buffers + accumulator
    # (plus the resident 2x weight buffers) within the VMEM budget.
    bytes_w = 2 * block_k * block_n * 4
    denom = 4 * (2 * block_k + 3 * block_n)
    block_m = max(8, ((_VMEM_BUDGET - bytes_w) // denom) // 8 * 8)
    block_m = min(block_m, 2048, _round_up(B, 8))

    # v7x megacore: if N fits one tile, make sure the "parallel" M axis has at
    # least two blocks so both TensorCores get work.
    if N_pad == block_n and block_m >= _round_up(B, 8) and B >= 16:
        block_m = max(8, _round_up(pl.cdiv(B, 2), 8))

    # Pad only what buys lane-dense / zero-safe tiles (weight, bias, K of x
    # when K is tiled).  x is NOT padded along the batch axis: the last M
    # block may be partial, and its out-of-range rows are never written.
    x_p = x if K_pad == K else jnp.pad(x, ((0, 0), (0, K_pad - K)))
    w_p = w_t
    if K_pad != K or N_pad != N:
        w_p = jnp.pad(w_t, ((0, K_pad - K), (0, N_pad - N)))
    b_p = bias if N_pad == N else jnp.pad(bias, (0, N_pad - N))

    out = _call_linear(
        x_p, w_p, b_p.reshape(1, N_pad),
        block_m=block_m, block_n=block_n, block_k=block_k,
    )
    return out if N_pad == N else out[:, :N]


if __name__ == "__main__":
    key = jax.random.PRNGKey(0)
    kx, kw, kb, kx2, kw2, kb2 = jax.random.split(key, 6)
    w_range = 0.1

    # --- shipped tiny config: SingleLayerRegression(32, 16), batch=8 -------
    input_dim, output_dim, batch = 32, 16, 8
    weight = jax.random.uniform(
        kw, (output_dim, input_dim), jnp.float32, minval=-w_range, maxval=w_range
    )
    bias = jax.random.uniform(
        kb, (output_dim,), jnp.float32, minval=-w_range, maxval=w_range
    )
    x = jax.random.normal(kx, (batch, input_dim), jnp.float32)

    out = jax.block_until_ready(single_layer_regression(x, weight, bias))
    ref = x @ weight.T + bias
    assert out.shape == (batch, output_dim)
    assert jnp.allclose(out, ref, atol=1e-5, rtol=1e-5), "mismatch (tiny config)"

    # --- general path: partial M block, K tiling, N padding, megacore split -
    in2, out2, b2 = 1280, 40, 200
    weight2 = jax.random.uniform(
        kw2, (out2, in2), jnp.float32, minval=-w_range, maxval=w_range
    )
    bias2 = jax.random.uniform(
        kb2, (out2,), jnp.float32, minval=-w_range, maxval=w_range
    )
    x2 = jax.random.normal(kx2, (b2, in2), jnp.float32)

    out_big = jax.block_until_ready(single_layer_regression(x2, weight2, bias2))
    ref_big = jnp.dot(x2, weight2.T, precision=jax.lax.Precision.HIGHEST) + bias2
    assert out_big.shape == (b2, out2)
    assert jnp.allclose(out_big, ref_big, atol=1e-3, rtol=1e-3), "mismatch (general path)"

    print("KERNEL_OK")
</pallas_src>

<mosaic_0001>
module attributes {stable_mosaic.version = 11 : i64} {
  func.func @_linear_kernel(%arg0: i32, %arg1: i32, %arg2: i32, %arg3: memref<8x32xf32, #tpu.memory_space<vmem>>, %arg4: memref<32x16xf32, #tpu.memory_space<vmem>>, %arg5: memref<1x16xf32, #tpu.memory_space<vmem>>, %arg6: memref<8x16xf32, #tpu.memory_space<vmem>>, %arg7: memref<8x16xf32, #tpu.memory_space<vmem>>) attributes {dimension_semantics = [#tpu.dimension_semantics<parallel>, #tpu.dimension_semantics<parallel>, #tpu.dimension_semantics<arbitrary>], iteration_bounds = array<i64: 1, 1, 1>, scalar_prefetch = 0 : i64, scratch_operands = 1 : i64, tpu.core_type = #tpu.core_type<tc>, window_params = [{transform_indices = @transform_0, window_bounds = array<i64: 8, 32>}, {transform_indices = @transform_1, window_bounds = array<i64: 32, 16>}, {transform_indices = @transform_2, window_bounds = array<i64: 1, 16>}, {transform_indices = @transform_3, window_bounds = array<i64: 8, 16>}]} {
    %c0_i32 = arith.constant 0 : i32
    %0 = arith.cmpi eq, %arg2, %c0_i32 : i32
    %1 = arith.extui %0 : i1 to i32
    %c0_i32_0 = arith.constant 0 : i32
    %2 = arith.cmpi ne, %1, %c0_i32_0 : i32
    scf.if %2 {
      %cst_10 = arith.constant 0.000000e+00 : f32
      %12 = vector.broadcast %cst_10 : f32 to vector<8x16xf32>
      %c0_11 = arith.constant 0 : index
      %c0_12 = arith.constant 0 : index
      %13 = vector.load %arg7[%c0_11, %c0_12] : memref<8x16xf32, #tpu.memory_space<vmem>>, vector<8x16xf32>
      tpu.vector_store %arg7[%c0_11, %c0_12], %12 {strides = array<i32>} : memref<8x16xf32, #tpu.memory_space<vmem>>, vector<8x16xf32>,
    } else {
    }
    %c0 = arith.constant 0 : index
    %c0_1 = arith.constant 0 : index
    %3 = vector.load %arg7[%c0, %c0_1] : memref<8x16xf32, #tpu.memory_space<vmem>>, vector<8x16xf32>
    %c0_2 = arith.constant 0 : index
    %c0_3 = arith.constant 0 : index
    %4 = vector.load %arg3[%c0_2, %c0_3] : memref<8x32xf32, #tpu.memory_space<vmem>>, vector<8x32xf32>
    %c0_4 = arith.constant 0 : index
    %c0_5 = arith.constant 0 : index
    %5 = vector.load %arg4[%c0_4, %c0_5] : memref<32x16xf32, #tpu.memory_space<vmem>>, vector<32x16xf32>
    %cst = arith.constant dense<0.000000e+00> : vector<8x16xf32>
    %6 = tpu.matmul %4, %5, %cst {dimension_numbers = #tpu.dot_dimension_numbers<[1], [0], [0], [1], [0, 0, 1, 1], [], []>} : vector<8x32xf32>, vector<32x16xf32>, vector<8x16xf32> -> vector<8x16xf32>
    %7 = arith.addf %3, %6 : vector<8x16xf32>
    %c0_6 = arith.constant 0 : index
    %c0_7 = arith.constant 0 : index
    %8 = vector.load %arg7[%c0_6, %c0_7] : memref<8x16xf32, #tpu.memory_space<vmem>>, vector<8x16xf32>
    tpu.vector_store %arg7[%c0_6, %c0_7], %7 {strides = array<i32>} : memref<8x16xf32, #tpu.memory_space<vmem>>, vector<8x16xf32>,
    %c0_i32_8 = arith.constant 0 : i32
    %9 = arith.cmpi eq, %arg2, %c0_i32_8 : i32
    %10 = arith.extui %9 : i1 to i32
    %c0_i32_9 = arith.constant 0 : i32
    %11 = arith.cmpi ne, %10, %c0_i32_9 : i32
    scf.if %11 {
      %c0_10 = arith.constant 0 : index
      %c0_11 = arith.constant 0 : index
      %12 = vector.load %arg7[%c0_10, %c0_11] : memref<8x16xf32, #tpu.memory_space<vmem>>, vector<8x16xf32>
      %c0_12 = arith.constant 0 : index
      %c0_13 = arith.constant 0 : index
      %13 = vector.load %arg5[%c0_12, %c0_13] : memref<1x16xf32, #tpu.memory_space<vmem>>, vector<1x16xf32>
      %14 = vector.broadcast %13 : vector<1x16xf32> to vector<8x16xf32>
      %15 = arith.addf %12, %14 : vector<8x16xf32>
      %c0_14 = arith.constant 0 : index
      %c0_15 = arith.constant 0 : index
      %16 = vector.load %arg6[%c0_14, %c0_15] : memref<8x16xf32, #tpu.memory_space<vmem>>, vector<8x16xf32>
      tpu.vector_store %arg6[%c0_14, %c0_15], %15 {strides = array<i32>} : memref<8x16xf32, #tpu.memory_space<vmem>>, vector<8x16xf32>,
    } else {
    }
    return
  }
  func.func @transform_0(%arg0: i32, %arg1: i32, %arg2: i32) -> (i32, i32) {
    %c0_i32 = arith.constant 0 : i32
    return %arg0, %arg2 : i32, i32
  }
  func.func @transform_1(%arg0: i32, %arg1: i32, %arg2: i32) -> (i32, i32) {
    %c0_i32 = arith.constant 0 : i32
    return %arg2, %arg1 : i32, i32
  }
  func.func @transform_2(%arg0: i32, %arg1: i32, %arg2: i32) -> (i32, i32) {
    %c0_i32 = arith.constant 0 : i32
    %c0_i32_0 = arith.constant 0 : i32
    return %c0_i32, %arg1 : i32, i32
  }
  func.func @transform_3(%arg0: i32, %arg1: i32, %arg2: i32) -> (i32, i32) {
    %c0_i32 = arith.constant 0 : i32
    return %arg0, %arg1 : i32, i32
  }
}

</mosaic_0001>

<llo_original>
// kernel: single_layer_regression.1
$region0: #{single_layer_regression.1}
  #allocation0 [shape = 'u32[]', space=smem, size = 0x4, offset = 0x4, fixed_abs, tag = 'smem constant byte address 0x4 - core index']
  #allocation1 [shape = 'u32[144,128]{1,0:T(1,128)}', space=vmem, size = 0x12000, scoped, tag = 'internal scratch']
  #allocation2 [shape = 'f32[8,16]{1,0:T(8,128)}', space=vmem, size = 0x1000, scoped, tag = 'scratch operand']
  %s0 = inlined_call_operand.vmem [shape: f32[8,32], index: 0, kind: input, shape index: {}]
  %s1 = inlined_call_operand.vmem [shape: f32[32,16], index: 1, kind: input, shape index: {}]
  %s2 = inlined_call_operand.vmem [shape: f32[1,16], index: 2, kind: input, shape index: {}]
  %s3 = inlined_call_operand.hbm [shape: f32[8,16], index: 3, kind: output, shape index: {}]
  %s4 = sld [smem:[#allocation0]]
  $region30: #{single_layer_regression.1} parent=0
    _
  %s6 = ssub.s32 1, %s4
  %s7 = scalar_select 0, %s6, %s4
  $region1: #{single_layer_regression.1} parent=0
    #allocation3 [shape = 'u8[4096]{0}', space=vmem, size = 0x1000, scoped, tag = 'output window, operand 0, single buffered']
    #allocation4 [shape = 's32[1]{0}', space=sflag, size = 0x4, scoped, tag = 'scoped memory for single_layer_regression.1']
    %8 = vsyncpa [#allocation4], 0
    // Predicated region
    $region2: #{single_layer_regression.1} parent=1 // pred_check
      _
    $region3: #{single_layer_regression.1} parent=1 // pred_check_branch
      %10 = sbr.rel (0) target = $region5
    $region4: #{single_layer_regression.1} parent=1 // pred_region
      _
    $region5: #{single_layer_regression.1} parent=1 // pred_fallthru
      _
    // Predicated region
    $region6: #{single_layer_regression.1} parent=1 // pred_check
      _
    $region7: #{single_layer_regression.1} parent=1 // pred_check_branch
      %12 = sbr.rel (0) target = $region9
    $region8: #{single_layer_regression.1} parent=1 // pred_region
      _
    $region9: #{single_layer_regression.1} parent=1 // pred_fallthru
      _
    // Predicated region
    $region10: #{single_layer_regression.1} parent=1 // pred_check
      _
    $region11: #{single_layer_regression.1} parent=1 // pred_check_branch
      %14 = sbr.rel (0) target = $region13
    $region12: #{single_layer_regression.1} parent=1 // pred_region
      _
    $region13: #{single_layer_regression.1} parent=1 // pred_fallthru
      _
    %p15 = scmp.eq.s32.totalorder 0, 0
    // Predicated region
    $region14: #{single_layer_regression.1} parent=1 // pred_check
      %p16 = pneg %p15
    $region15: #{single_layer_regression.1} parent=1 // pred_check_branch
      %18 = sbr.rel (%p16) target = $region17
    $region16: #{single_layer_regression.1} parent=1 // pred_region
      %vm19 = vcmask 130048
      %20 = vst.msk [vmem:[#allocation2] sm:$0xff] %vm19, 0.0
    $region17: #{single_layer_regression.1} parent=1 // pred_fallthru
      _
    %v21 = vld [vmem:[#allocation2] sm:$0xff]
    %v22 = vld [vmem:[%s0] sm:$0xff]
    %v23 = vld [vmem:[%s1] sm:$0xff]
    %v24 = vld [vmem:[%s1 + $0x8] sm:$0xff]
    %v25 = vld [vmem:[%s1 + $0x10] sm:$0xff]
    %v26 = vld [vmem:[%s1 + $0x18] sm:$0xff]
    %vm27 = vcmask 261120
    %v29 = vsel %vm27, %v22, 0
    %31 = vmatprep.subr.mxu0 0.0
    %32 = vmatpush1.msra.mxu0 %v23
    %33 = vmatprep.subr.mxu0 0.0
    %34 = vmatpush1.msra.mxu0 %v24
    %35 = vmatprep.subr.mxu0 0.0
    %36 = vmatpush1.msra.mxu0 %v25
    %37 = vmatprep.subr.mxu0 0.0
    %38 = vmatpush1.msra.mxu0 %v26
    %39 = vmatprep.subr.mxu0 0.0
    %40 = vmatpush1.msra.mxu0 0.0
    %41 = vmatprep.subr.mxu0 0.0
    %42 = vmatpush1.msra.mxu0 0.0
    %43 = vmatprep.subr.mxu0 0.0
    %44 = vmatpush1.msra.mxu0 0.0
    %45 = vmatprep.subr.mxu0 0.0
    %46 = vmatpush1.msra.mxu0 0.0
    %47 = vmatprep.subr.mxu0 0.0
    %48 = vmatpush1.msra.mxu0 0.0
    %49 = vmatprep.subr.mxu0 0.0
    %50 = vmatpush1.msra.mxu0 0.0
    %51 = vmatprep.subr.mxu0 0.0
    %52 = vmatpush1.msra.mxu0 0.0
    %53 = vmatprep.subr.mxu0 0.0
    %54 = vmatpush1.msra.mxu0 0.0
    %55 = vmatprep.subr.mxu0 0.0
    %56 = vmatpush1.msra.mxu0 0.0
    %57 = vmatprep.subr.mxu0 0.0
    %58 = vmatpush1.msra.mxu0 0.0
    %59 = vmatprep.subr.mxu0 0.0
    %60 = vmatpush1.msra.mxu0 0.0
    %61 = vmatprep.subr.mxu0 0.0
    %62 = vmatpush1.msra.mxu0 0.0
    %63 = vmatprep.subr.mxu0 0.0
    %64 = vmatpush1.msra.mxu0 0.0
    %65 = vmatprep.subr.mxu0 0.0
    %66 = vmatpush1.msra.mxu0 0.0
    %67 = vmatprep.subr.mxu0 0.0
    %68 = vmatpush1.msra.mxu0 0.0
    %69 = vmatprep.subr.mxu0 0.0
    %70 = vmatpush1.msra.mxu0 0.0
    %71 = vmatprep.subr.mxu0 0.0
    %72 = vmatpush1.msra.mxu0 0.0
    %73 = vmatprep.subr.mxu0 0.0
    %74 = vmatpush1.msra.mxu0 0.0
    %75 = vmatprep.subr.mxu0 0.0
    %76 = vmatpush1.msra.mxu0 0.0
    %77 = vmatprep.subr.mxu0 0.0
    %78 = vmatpush1.msra.mxu0 0.0
    %79 = vmatprep.subr.mxu0 0.0
    %80 = vmatpush1.msra.mxu0 0.0
    %81 = vmatprep.subr.mxu0 0.0
    %82 = vmatpush1.msra.mxu0 0.0
    %83 = vmatprep.subr.mxu0 0.0
    %84 = vmatpush1.msra.mxu0 0.0
    %85 = vmatprep.subr.mxu0 0.0
    %86 = vmatpush1.msra.mxu0 0.0
    %87 = vmatprep.subr.mxu0 0.0
    %88 = vmatpush1.msra.mxu0 0.0
    %89 = vmatprep.subr.mxu0 0.0
    %90 = vmatpush1.msra.mxu0 0.0
    %91 = vmatprep.subr.mxu0 0.0
    %92 = vmatpush1.msra.mxu0 0.0
    %93 = vmatprep.subr.mxu0 0.0
    %94 = vmatpush1.msra.mxu0 0.0
    %95 = vmatprep.mubr.f32.mxu0 0.0
    %96 = vmatmul.mubr.f32.gmra.mrb[0].mxu0 %v29
    %v97 = vpop.f32.mrb[0].mxu0
    %v98 = vadd.f32 0.0, %v97
    %v99 = vpop.f32.mrb[0].mxu0
    %100 = vdwg.mxu0
    %v101 = vadd.f32 %v21, %v98
    %vm102 = vcmask 130048
    %103 = vst.msk [vmem:[#allocation2] sm:$0xff] %vm102, %v101
    // Predicated region
    $region18: #{single_layer_regression.1} parent=1 // pred_check
      %p104 = pneg %p15
    $region19: #{single_layer_regression.1} parent=1 // pred_check_branch
      %106 = sbr.rel (%p104) target = $region21
    $region20: #{single_layer_regression.1} parent=1 // pred_region
      %v107 = vld [vmem:[#allocation2] sm:$0xff]
      %v108 = vld [vmem:[%s2] sm:$0x1]
      %v110 = vlaneseq
      %v111 = vshrl.u32 %v110, 7
      %v112 = vsub.s32 0, %v111
      %v113 = vrot.slane %v108, %v112
      %v115 = vadd.f32 %v107, %v113
      %116 = vst.msk [vmem:[#allocation3] sm:$0xff] %vm102, %v115
    $region21: #{single_layer_regression.1} parent=1 // pred_fallthru
      _
    // Predicated region
    $region22: #{single_layer_regression.1} parent=1 // pred_check
      _
    $region23: #{single_layer_regression.1} parent=1 // pred_check_branch
      %118 = sbr.rel (0) target = $region25
    $region24: #{single_layer_regression.1} parent=1 // pred_region
      %s120 = ssub.s32 128, 128
      %121 = vsyncadd [#allocation4], %s120
      %s123 = sshll.u32 [#allocation3], 4
      %s124 = int_to_ptr.vmem [resolvable:$true] %s123
      %126 = dma.vmem_to_hbm [thread:$0]  %s124, 128, %s3, [#allocation4]
    $region25: #{single_layer_regression.1} parent=1 // pred_fallthru
      _
    // Predicated region
    $region26: #{single_layer_regression.1} parent=1 // pred_check
      _
    $region27: #{single_layer_regression.1} parent=1 // pred_check_branch
      %128 = sbr.rel (0) target = $region29
    $region28: #{single_layer_regression.1} parent=1 // pred_region
      %129 = dma.done [#allocation4], 128
    $region29: #{single_layer_regression.1} parent=1 // pred_fallthru
      _
    %130 = vsyncpa [#allocation4], 1

</llo_original>
